<compile_context>
chip_gen: v7x
topology: tpu7x:2x2x1
jax: 0.10.0
libtpu: 0.0.40
codegen_flags: <defaults>
</compile_context>

<pallas_src>
import functools

import jax
import jax.numpy as jnp
from jax.experimental import pallas as pl
from jax.experimental.pallas import tpu as pltpu


def stochastic_head_kernel(x_ref, w_ref, b_ref, eps_ref, out_ref, *, o):
    """One fused MXU matmul for both heads + reparameterization per batch tile.

    Weight slab lanes:  [0,o) = W_mu^T,  [o,2o) = W_logvar^T,  rest zero.
    Output slab lanes:  [0,o) = mu,  [o,2o) = logvar,  [2o,3o) = embedding.
    """
    # y = [ mu | logvar | 0 ... ]  (tb, o_pad), f32 MXU accumulation.
    y = jnp.dot(x_ref[...], w_ref[...],
                preferred_element_type=jnp.float32) + b_ref[...]

    # Wide, lane-dense store of the slab; lanes >= 2o are exact zeros because
    # the padded weight/bias columns are zero.
    out_ref[...] = y.astype(out_ref.dtype)

    # Reparameterize:  std = sqrt(exp(logvar)) == exp(0.5 * logvar)  (EUP).
    mu = y[:, :o]
    logvar = y[:, o:2 * o]
    emb = mu + eps_ref[...].astype(jnp.float32) * jnp.exp(0.5 * logvar)

    # Drop the embedding into lanes [2o, 3o) of the same slab.  This is a tiny
    # masked VMEM store; the HBM writeback of the block stays one wide DMA.
    out_ref[:, 2 * o:3 * o] = emb.astype(out_ref.dtype)


def pack_params(w_mu, b_mu, w_lv, b_lv):
    """Fuse the two nn.Linear heads into one lane-padded weight/bias slab.

    Call ONCE (module init) — packing is hoisted out of the per-call path.
    Lanes [0,O) hold the mu head, lanes [O,2O) the logvar head, rest zero.
    """
    O, D = w_mu.shape
    o_pad = max(128, pl.cdiv(3 * O, 128) * 128)   # output slab also holds emb
    w = jnp.zeros((D, o_pad), jnp.float32)
    w = w.at[:, :O].set(w_mu.T.astype(jnp.float32))
    w = w.at[:, O:2 * O].set(w_lv.T.astype(jnp.float32))
    b = jnp.zeros((1, o_pad), jnp.float32)
    b = b.at[0, :O].set(b_mu.astype(jnp.float32))
    b = b.at[0, O:2 * O].set(b_lv.astype(jnp.float32))
    return w, b


@functools.partial(jax.jit, static_argnames=("output_dim", "tile_b", "use_bf16"))
def stochastic_task_forward(x, w_packed, b_packed, eps, *, output_dim,
                            tile_b=1024, use_bf16=False):
    """
    x:        (B, D) float32
    w_packed: (D, o_pad) float32   from pack_params (precomputed once)
    b_packed: (1, o_pad) float32
    eps:      (B, O)  float32      standard-normal noise (randn_like equivalent)
    returns (mu, logvar, embedding), each (B, O) float32
    """
    B, D = x.shape
    O = output_dim
    o_pad = w_packed.shape[1]

    # --- batch tiling: balanced tiles; >=2 (even) tiles whenever possible so
    #     v7x can shard the "parallel" grid axis across both TensorCores. ---
    granule = 16 if use_bf16 else 8
    n_tiles = pl.cdiv(B, tile_b)
    if B >= 2 * granule:
        n_tiles = max(n_tiles, 2)
        if n_tiles % 2:
            n_tiles += 1
        n_tiles = min(n_tiles, B // granule)
    tb = pl.cdiv(pl.cdiv(B, n_tiles), granule) * granule
    b_pad = pl.cdiv(B, tb) * tb

    x_p = x if b_pad == B else jnp.pad(x, ((0, b_pad - B), (0, 0)))
    eps_p = eps if b_pad == B else jnp.pad(eps, ((0, b_pad - B), (0, 0)))

    if use_bf16:
        # Halve the dominant HBM stream; accumulation stays f32 on the MXU.
        x_p = x_p.astype(jnp.bfloat16)
        w_packed = w_packed.astype(jnp.bfloat16)

    grid = (b_pad // tb,)

    out = pl.pallas_call(
        functools.partial(stochastic_head_kernel, o=O),
        out_shape=jax.ShapeDtypeStruct((b_pad, o_pad), jnp.float32),
        grid=grid,
        in_specs=[
            pl.BlockSpec((tb, D), lambda i: (i, 0)),       # x batch tile
            pl.BlockSpec((D, o_pad), lambda i: (0, 0)),    # fused weights (resident)
            pl.BlockSpec((1, o_pad), lambda i: (0, 0)),    # fused bias (resident)
            pl.BlockSpec((tb, O), lambda i: (i, 0)),       # eps, un-padded lanes
        ],
        out_specs=pl.BlockSpec((tb, o_pad), lambda i: (i, 0)),
        compiler_params=pltpu.CompilerParams(
            dimension_semantics=("parallel",),
            vmem_limit_bytes=48 * 1024 * 1024),
    )(x_p, w_packed, b_packed, eps_p)

    mu = out[:B, :O]
    logvar = out[:B, O:2 * O]
    emb = out[:B, 2 * O:3 * O]
    return mu, logvar, emb


if __name__ == "__main__":
    # Small shapes consistent with the module head: input_dim=32, output_dim=3.
    D, O = 32, 3

    key = jax.random.PRNGKey(0)
    k_wmu, k_bmu, k_wlv, k_blv = jax.random.split(key, 4)

    # Deterministic synthetic parameters (nn.Linear shapes).
    w_mu = jax.random.normal(k_wmu, (O, D), dtype=jnp.float32) * 0.05
    b_mu = jax.random.normal(k_bmu, (O,), dtype=jnp.float32) * 0.05
    w_lv = jax.random.normal(k_wlv, (O, D), dtype=jnp.float32) * 0.05
    b_lv = jax.random.normal(k_blv, (O,), dtype=jnp.float32) * 0.05

    # Pack the two heads once (hoisted out of the per-call path).
    w_packed, b_packed = pack_params(w_mu, b_mu, w_lv, b_lv)

    def reference(x, eps):
        hp = jax.lax.Precision.HIGHEST
        mu = jnp.dot(x, w_mu.T, precision=hp) + b_mu
        lv = jnp.dot(x, w_lv.T, precision=hp) + b_lv
        return mu, lv, mu + eps * jnp.exp(0.5 * lv)

    # Exercise both the single-tile path (B=8) and the multi-tile/ragged path
    # (B=40 -> two balanced 24-row tiles with zero-padded tail rows).
    for B in (8, 40):
        kb = jax.random.fold_in(key, B)
        k_x, k_eps = jax.random.split(kb)
        x = jax.random.normal(k_x, (B, D), dtype=jnp.float32)
        # epsilon ~ N(0,1) (torch.randn_like equivalent), generated host-side so
        # the kernel output can be checked exactly against a pure-JAX reference.
        # TODO(synk): could instead be drawn in-kernel via pltpu.prng_seed +
        # pltpu.stateful_normal (different RNG stream than torch.randn_like).
        eps = jax.random.normal(k_eps, (B, O), dtype=jnp.float32)

        mu, logvar, emb = stochastic_task_forward(
            x, w_packed, b_packed, eps, output_dim=O)
        jax.block_until_ready((mu, logvar, emb))

        mu_r, lv_r, emb_r = reference(x, eps)
        assert jnp.allclose(mu, mu_r, atol=1e-4, rtol=1e-4)
        assert jnp.allclose(logvar, lv_r, atol=1e-4, rtol=1e-4)
        assert jnp.allclose(emb, emb_r, atol=1e-4, rtol=1e-4)

    print("KERNEL_OK")
</pallas_src>

<mosaic_0001>
module attributes {stable_mosaic.version = 11 : i64} {
  func.func @stochastic_head_kernel(%arg0: i32, %arg1: memref<8x32xf32, #tpu.memory_space<vmem>>, %arg2: memref<32x128xf32, #tpu.memory_space<vmem>>, %arg3: memref<1x128xf32, #tpu.memory_space<vmem>>, %arg4: memref<8x3xf32, #tpu.memory_space<vmem>>, %arg5: memref<8x128xf32, #tpu.memory_space<vmem>>) attributes {dimension_semantics = [#tpu.dimension_semantics<parallel>], iteration_bounds = array<i64: 1>, scalar_prefetch = 0 : i64, scratch_operands = 0 : i64, tpu.core_type = #tpu.core_type<tc>, window_params = [{transform_indices = @transform_0, window_bounds = array<i64: 8, 32>}, {pipeline_mode = #tpu.pipeline_mode<synchronous>, transform_indices = @transform_1, window_bounds = array<i64: 32, 128>}, {pipeline_mode = #tpu.pipeline_mode<synchronous>, transform_indices = @transform_2, window_bounds = array<i64: 1, 128>}, {transform_indices = @transform_3, window_bounds = array<i64: 8, 3>}, {transform_indices = @transform_4, window_bounds = array<i64: 8, 128>}]} {
    %c0 = arith.constant 0 : index
    %c0_0 = arith.constant 0 : index
    %0 = vector.load %arg1[%c0, %c0_0] : memref<8x32xf32, #tpu.memory_space<vmem>>, vector<8x32xf32>
    %c0_1 = arith.constant 0 : index
    %c0_2 = arith.constant 0 : index
    %1 = vector.load %arg2[%c0_1, %c0_2] : memref<32x128xf32, #tpu.memory_space<vmem>>, vector<32x128xf32>
    %cst = arith.constant dense<0.000000e+00> : vector<8x128xf32>
    %2 = tpu.matmul %0, %1, %cst {dimension_numbers = #tpu.dot_dimension_numbers<[1], [0], [0], [1], [0, 0, 1, 1], [], []>} : vector<8x32xf32>, vector<32x128xf32>, vector<8x128xf32> -> vector<8x128xf32>
    %c0_3 = arith.constant 0 : index
    %c0_4 = arith.constant 0 : index
    %3 = vector.load %arg3[%c0_3, %c0_4] : memref<1x128xf32, #tpu.memory_space<vmem>>, vector<1x128xf32>
    %4 = vector.broadcast %3 : vector<1x128xf32> to vector<8x128xf32>
    %5 = arith.addf %2, %4 : vector<8x128xf32>
    %c0_5 = arith.constant 0 : index
    %c0_6 = arith.constant 0 : index
    %6 = vector.load %arg5[%c0_5, %c0_6] : memref<8x128xf32, #tpu.memory_space<vmem>>, vector<8x128xf32>
    tpu.vector_store %arg5[%c0_5, %c0_6], %5 {strides = array<i32>} : memref<8x128xf32, #tpu.memory_space<vmem>>, vector<8x128xf32>,
    %7 = vector.extract_strided_slice %5 {offsets = [0, 0], sizes = [8, 3], strides = [1, 1]} : vector<8x128xf32> to vector<8x3xf32>
    %8 = vector.extract_strided_slice %5 {offsets = [0, 3], sizes = [8, 3], strides = [1, 1]} : vector<8x128xf32> to vector<8x3xf32>
    %c0_7 = arith.constant 0 : index
    %c0_8 = arith.constant 0 : index
    %9 = vector.load %arg4[%c0_7, %c0_8] : memref<8x3xf32, #tpu.memory_space<vmem>>, vector<8x3xf32>
    %cst_9 = arith.constant 5.000000e-01 : f32
    %10 = vector.broadcast %cst_9 : f32 to vector<8x3xf32>
    %11 = arith.mulf %10, %8 : vector<8x3xf32>
    %12 = math.exp %11 : vector<8x3xf32>
    %13 = arith.mulf %9, %12 : vector<8x3xf32>
    %14 = arith.addf %7, %13 : vector<8x3xf32>
    %c0_10 = arith.constant 0 : index
    %c6 = arith.constant 6 : index
    %15 = vector.load %arg5[%c0_10, %c6] : memref<8x128xf32, #tpu.memory_space<vmem>>, vector<8x3xf32>
    tpu.vector_store %arg5[%c0_10, %c6], %14 {strides = array<i32>} : memref<8x128xf32, #tpu.memory_space<vmem>>, vector<8x3xf32>,
    return
  }
  func.func @transform_0(%arg0: i32) -> (i32, i32) {
    %c0_i32 = arith.constant 0 : i32
    %c0_i32_0 = arith.constant 0 : i32
    return %arg0, %c0_i32 : i32, i32
  }
  func.func @transform_1(%arg0: i32) -> (i32, i32) {
    %c0_i32 = arith.constant 0 : i32
    %c0_i32_0 = arith.constant 0 : i32
    %c0_i32_1 = arith.constant 0 : i32
    return %c0_i32, %c0_i32_0 : i32, i32
  }
  func.func @transform_2(%arg0: i32) -> (i32, i32) {
    %c0_i32 = arith.constant 0 : i32
    %c0_i32_0 = arith.constant 0 : i32
    %c0_i32_1 = arith.constant 0 : i32
    return %c0_i32, %c0_i32_0 : i32, i32
  }
  func.func @transform_3(%arg0: i32) -> (i32, i32) {
    %c0_i32 = arith.constant 0 : i32
    %c0_i32_0 = arith.constant 0 : i32
    return %arg0, %c0_i32 : i32, i32
  }
  func.func @transform_4(%arg0: i32) -> (i32, i32) {
    %c0_i32 = arith.constant 0 : i32
    %c0_i32_0 = arith.constant 0 : i32
    return %arg0, %c0_i32 : i32, i32
  }
}

</mosaic_0001>

<llo_original>
// kernel: stochastic_task_forward.1
$region0: #{stochastic_task_forward.1}
  #allocation0 [shape = 'u32[]', space=smem, size = 0x4, offset = 0x4, fixed_abs, tag = 'smem constant byte address 0x4 - core index']
  #allocation1 [shape = 'u32[144,128]{1,0:T(1,128)}', space=vmem, size = 0x12000, scoped, tag = 'internal scratch']
  %s0 = inlined_call_operand.vmem [shape: f32[8,32], index: 0, kind: input, shape index: {}]
  %s1 = inlined_call_operand.hbm [shape: f32[32,128], index: 1, kind: input, shape index: {}]
  %s2 = inlined_call_operand.vmem [shape: f32[1,128], index: 2, kind: input, shape index: {}]
  %s3 = inlined_call_operand.vmem [shape: f32[8,3], index: 3, kind: input, shape index: {}]
  %s4 = inlined_call_operand.vmem [shape: f32[8,128], index: 4, kind: output, shape index: {}]
  %s5 = sld [smem:[#allocation0]]
  $region30: #{stochastic_task_forward.1} parent=0
    _
  %s7 = ssub.s32 1, %s5
  %s8 = scalar_select 0, %s7, %s5
  $region1: #{stochastic_task_forward.1} parent=0
    #allocation2 [shape = 'u8[16384]{0}', space=vmem, size = 0x4000, scoped, tag = 'input window, operand 1, single buffered']
    #allocation3 [shape = 's32[1]{0}', space=sflag, size = 0x4, scoped, tag = 'scoped memory for stochastic_task_forward.1']
    %9 = vsyncpa [#allocation3], 0
    // Predicated region
    $region2: #{stochastic_task_forward.1} parent=1 // pred_check
      _
    $region3: #{stochastic_task_forward.1} parent=1 // pred_check_branch
      %11 = sbr.rel (0) target = $region5
    $region4: #{stochastic_task_forward.1} parent=1 // pred_region
      _
    $region5: #{stochastic_task_forward.1} parent=1 // pred_fallthru
      _
    // Predicated region
    $region6: #{stochastic_task_forward.1} parent=1 // pred_check
      _
    $region7: #{stochastic_task_forward.1} parent=1 // pred_check_branch
      %13 = sbr.rel (0) target = $region9
    $region8: #{stochastic_task_forward.1} parent=1 // pred_region
      %s15 = ssub.s32 512, 512
      %16 = vsyncadd [#allocation3], %s15
      %s17 = sshll.u32 [#allocation2], 4
      %s18 = int_to_ptr.vmem [resolvable:$true] %s17
      %23 = dma.hbm_to_vmem [thread:$0]  %s1, 512, %s18, [#allocation3], 128, 128, 8
    $region9: #{stochastic_task_forward.1} parent=1 // pred_fallthru
      _
    // Predicated region
    $region10: #{stochastic_task_forward.1} parent=1 // pred_check
      _
    $region11: #{stochastic_task_forward.1} parent=1 // pred_check_branch
      %25 = sbr.rel (0) target = $region13
    $region12: #{stochastic_task_forward.1} parent=1 // pred_region
      _
    $region13: #{stochastic_task_forward.1} parent=1 // pred_fallthru
      _
    // Predicated region
    $region14: #{stochastic_task_forward.1} parent=1 // pred_check
      _
    $region15: #{stochastic_task_forward.1} parent=1 // pred_check_branch
      %27 = sbr.rel (0) target = $region17
    $region16: #{stochastic_task_forward.1} parent=1 // pred_region
      _
    $region17: #{stochastic_task_forward.1} parent=1 // pred_fallthru
      _
    // Predicated region
    $region18: #{stochastic_task_forward.1} parent=1 // pred_check
      _
    $region19: #{stochastic_task_forward.1} parent=1 // pred_check_branch
      %29 = sbr.rel (0) target = $region21
    $region20: #{stochastic_task_forward.1} parent=1 // pred_region
      %30 = dma.done [#allocation3], 512
    $region21: #{stochastic_task_forward.1} parent=1 // pred_fallthru
      _
    %v31 = vld [vmem:[%s0] sm:$0xff]
    %v32 = vld [vmem:[#allocation2] sm:$0xff]
    %v33 = vld [vmem:[#allocation2 + $0x8] sm:$0xff]
    %v34 = vld [vmem:[#allocation2 + $0x10] sm:$0xff]
    %v35 = vld [vmem:[#allocation2 + $0x18] sm:$0xff]
    %v36 = vld [vmem:[%s2] sm:$0x1]
    %v38 = vlaneseq
    %v39 = vshrl.u32 %v38, 7
    %v40 = vsub.s32 0, %v39
    %v41 = vrot.slane %v36, %v40
    %vm43 = vcmask 261120
    %v45 = vsel %vm43, %v31, 0
    %47 = vmatprep.subr.mxu0 0.0
    %48 = vmatpush1.msra.mxu0 %v32
    %49 = vmatprep.subr.mxu0 0.0
    %50 = vmatpush1.msra.mxu0 %v33
    %51 = vmatprep.subr.mxu0 0.0
    %52 = vmatpush1.msra.mxu0 %v34
    %53 = vmatprep.subr.mxu0 0.0
    %54 = vmatpush1.msra.mxu0 %v35
    %55 = vmatprep.subr.mxu0 0.0
    %56 = vmatpush1.msra.mxu0 0.0
    %57 = vmatprep.subr.mxu0 0.0
    %58 = vmatpush1.msra.mxu0 0.0
    %59 = vmatprep.subr.mxu0 0.0
    %60 = vmatpush1.msra.mxu0 0.0
    %61 = vmatprep.subr.mxu0 0.0
    %62 = vmatpush1.msra.mxu0 0.0
    %63 = vmatprep.subr.mxu0 0.0
    %64 = vmatpush1.msra.mxu0 0.0
    %65 = vmatprep.subr.mxu0 0.0
    %66 = vmatpush1.msra.mxu0 0.0
    %67 = vmatprep.subr.mxu0 0.0
    %68 = vmatpush1.msra.mxu0 0.0
    %69 = vmatprep.subr.mxu0 0.0
    %70 = vmatpush1.msra.mxu0 0.0
    %71 = vmatprep.subr.mxu0 0.0
    %72 = vmatpush1.msra.mxu0 0.0
    %73 = vmatprep.subr.mxu0 0.0
    %74 = vmatpush1.msra.mxu0 0.0
    %75 = vmatprep.subr.mxu0 0.0
    %76 = vmatpush1.msra.mxu0 0.0
    %77 = vmatprep.subr.mxu0 0.0
    %78 = vmatpush1.msra.mxu0 0.0
    %79 = vmatprep.subr.mxu0 0.0
    %80 = vmatpush1.msra.mxu0 0.0
    %81 = vmatprep.subr.mxu0 0.0
    %82 = vmatpush1.msra.mxu0 0.0
    %83 = vmatprep.subr.mxu0 0.0
    %84 = vmatpush1.msra.mxu0 0.0
    %85 = vmatprep.subr.mxu0 0.0
    %86 = vmatpush1.msra.mxu0 0.0
    %87 = vmatprep.subr.mxu0 0.0
    %88 = vmatpush1.msra.mxu0 0.0
    %89 = vmatprep.subr.mxu0 0.0
    %90 = vmatpush1.msra.mxu0 0.0
    %91 = vmatprep.subr.mxu0 0.0
    %92 = vmatpush1.msra.mxu0 0.0
    %93 = vmatprep.subr.mxu0 0.0
    %94 = vmatpush1.msra.mxu0 0.0
    %95 = vmatprep.subr.mxu0 0.0
    %96 = vmatpush1.msra.mxu0 0.0
    %97 = vmatprep.subr.mxu0 0.0
    %98 = vmatpush1.msra.mxu0 0.0
    %99 = vmatprep.subr.mxu0 0.0
    %100 = vmatpush1.msra.mxu0 0.0
    %101 = vmatprep.subr.mxu0 0.0
    %102 = vmatpush1.msra.mxu0 0.0
    %103 = vmatprep.subr.mxu0 0.0
    %104 = vmatpush1.msra.mxu0 0.0
    %105 = vmatprep.subr.mxu0 0.0
    %106 = vmatpush1.msra.mxu0 0.0
    %107 = vmatprep.subr.mxu0 0.0
    %108 = vmatpush1.msra.mxu0 0.0
    %109 = vmatprep.subr.mxu0 0.0
    %110 = vmatpush1.msra.mxu0 0.0
    %111 = vmatprep.mubr.f32.mxu0 0.0
    %112 = vmatmul.mubr.f32.gmra.mrb[0].mxu0 %v45
    %v113 = vpop.f32.mrb[0].mxu0
    %v114 = vadd.f32 %v41, %v113
    %v115 = vpop.f32.mrb[0].mxu0
    %116 = vdwg.mxu0
    %117 = vst [vmem:[%s4] sm:$0xff] %v114
    %v118 = vld [vmem:[%s3] sm:$0xff]
    %v119 = vmul.f32 %v114, 0.5
    %v120 = vmul.f32 %v119, 1.442695
    %v121 = vpow.pop %v120
    %123 = vrot.lane.b32.xlu0 %v121, 125
    %v124 = vpop.permute.xlu0 %123
    %v126 = vmul.f32 %v118, %v124
    %v127 = vadd.f32 %v114, %v126
    %129 = vrot.lane.b32.xlu0 %v127, 6
    %v130 = vpop.permute.xlu0 %129
    %vm132 = vcmask 72752
    %133 = vst.msk [vmem:[%s4] sm:$0xff] %vm132, %v130
    // Predicated region
    $region22: #{stochastic_task_forward.1} parent=1 // pred_check
      _
    $region23: #{stochastic_task_forward.1} parent=1 // pred_check_branch
      %135 = sbr.rel (0) target = $region25
    $region24: #{stochastic_task_forward.1} parent=1 // pred_region
      _
    $region25: #{stochastic_task_forward.1} parent=1 // pred_fallthru
      _
    // Predicated region
    $region26: #{stochastic_task_forward.1} parent=1 // pred_check
      _
    $region27: #{stochastic_task_forward.1} parent=1 // pred_check_branch
      %137 = sbr.rel (0) target = $region29
    $region28: #{stochastic_task_forward.1} parent=1 // pred_region
      _
    $region29: #{stochastic_task_forward.1} parent=1 // pred_fallthru
      _
    %138 = vsyncpa [#allocation3], 1

</llo_original>
